<compile_context>
chip_gen: v6e
topology: v6e:2x2x1
jax: 0.10.0
libtpu: 0.0.40
codegen_flags: <defaults>
</compile_context>

<pallas_src>
import functools
import math

import jax
import jax.numpy as jnp
from jax import lax
from jax.experimental import pallas as pl
from jax.experimental.pallas import tpu as pltpu

_VMEM_LIMIT = 64 * 1024 * 1024


def _rup(a, m):
    return ((a + m - 1) // m) * m


# ----------------------------------------------------------------------------
# Tiled LayerNorm (encoder-stub outputs + hoisted LN for wide-N / multi-K matmuls)
# ----------------------------------------------------------------------------
def _layernorm_kernel(x_ref, g_ref, b_ref, o_ref, *, eps):
    x = x_ref[...].astype(jnp.float32)
    mu = jnp.mean(x, axis=-1, keepdims=True)
    var = jnp.mean(jnp.square(x - mu), axis=-1, keepdims=True)
    y = (x - mu) * lax.rsqrt(var + eps)
    o_ref[...] = (y * g_ref[...] + b_ref[...]).astype(o_ref.dtype)


def pallas_layernorm(x, gamma, beta, *, eps=1e-5, out_dtype=jnp.bfloat16, tm_target=512):
    orig = x.shape
    d = orig[-1]
    x2 = x.reshape(-1, d)
    m = x2.shape[0]
    if m <= 2 * tm_target:
        tm, mp = m, m
    else:
        tm, mp = tm_target, _rup(m, tm_target)
        x2 = jnp.pad(x2, ((0, mp - m), (0, 0)))
    out = pl.pallas_call(
        functools.partial(_layernorm_kernel, eps=eps),
        out_shape=jax.ShapeDtypeStruct((mp, d), out_dtype),
        grid=(mp // tm,),
        in_specs=[
            pl.BlockSpec((tm, d), lambda i: (i, 0)),
            pl.BlockSpec((1, d), lambda i: (0, 0)),
            pl.BlockSpec((1, d), lambda i: (0, 0)),
        ],
        out_specs=pl.BlockSpec((tm, d), lambda i: (i, 0)),
        compiler_params=pltpu.CompilerParams(dimension_semantics=("parallel",)),
    )(x2, jnp.asarray(gamma, jnp.float32).reshape(1, d),
      jnp.asarray(beta, jnp.float32).reshape(1, d))
    if mp != m:
        out = out[:m]
    return out.reshape(*orig[:-1], d)


# ----------------------------------------------------------------------------
# Fused tiled matmul:  [LN(x)] @ W + b  [-> QuickGELU] [+ residual]
# ----------------------------------------------------------------------------
def _mm_k1_kernel(*refs, has_ln, has_res, act, eps):
    # Single K-tile fast path: no accumulator scratch, dot feeds the epilogue directly.
    if has_ln and has_res:
        x_ref, w_ref, b_ref, g_ref, bb_ref, r_ref, o_ref = refs
    elif has_ln:
        x_ref, w_ref, b_ref, g_ref, bb_ref, o_ref = refs
        r_ref = None
    elif has_res:
        x_ref, w_ref, b_ref, r_ref, o_ref = refs
        g_ref = bb_ref = None
    else:
        x_ref, w_ref, b_ref, o_ref = refs
        r_ref = g_ref = bb_ref = None

    x = x_ref[...]                                   # bf16 (tm, K)
    if has_ln:                                       # whole reduction axis is in this tile
        xf = x.astype(jnp.float32)
        mu = jnp.mean(xf, axis=-1, keepdims=True)
        var = jnp.mean(jnp.square(xf - mu), axis=-1, keepdims=True)
        xn = (xf - mu) * lax.rsqrt(var + eps)
        x = (xn * g_ref[...] + bb_ref[...]).astype(jnp.bfloat16)

    r = jnp.dot(x, w_ref[...], preferred_element_type=jnp.float32) + b_ref[...]
    if act == "quickgelu":
        r = r * jax.nn.sigmoid(1.702 * r)
    if r_ref is not None:
        r = r + r_ref[...].astype(jnp.float32)
    o_ref[...] = r.astype(o_ref.dtype)


def _mm_kernel(*refs, nk, has_res, act):
    # Multi K-tile path (LN is always hoisted before this).  k==0 writes the accumulator
    # directly (no zero-init + read-modify-write of a freshly zeroed tile).
    if has_res:
        x_ref, w_ref, b_ref, r_ref, o_ref, acc_ref = refs
    else:
        x_ref, w_ref, b_ref, o_ref, acc_ref = refs
        r_ref = None

    k_i = pl.program_id(2)
    part = jnp.dot(x_ref[...], w_ref[...], preferred_element_type=jnp.float32)

    @pl.when(k_i == 0)
    def _():
        acc_ref[...] = part

    @pl.when(k_i > 0)
    def _():
        acc_ref[...] += part

    @pl.when(k_i == nk - 1)
    def _():
        r = acc_ref[...] + b_ref[...]
        if act == "quickgelu":
            r = r * jax.nn.sigmoid(1.702 * r)
        if r_ref is not None:
            r = r + r_ref[...].astype(jnp.float32)
        o_ref[...] = r.astype(o_ref.dtype)


def fused_linear(x, w, bias, *, ln=None, act=None, residual=None,
                 out_dtype=jnp.bfloat16, eps=1e-5, tm=512, tn=512, tk=1024):
    """y = [optional LN](x) @ w + bias, optional QuickGELU, optional residual add.

    x: (..., K), w: (K, N), bias: (N,)/(1, N).  bf16 MXU operands, f32 accumulation.
    """
    orig = x.shape
    K = orig[-1]
    N = w.shape[1]
    x2 = x.reshape(-1, K).astype(jnp.bfloat16)
    M = x2.shape[0]
    w = w.astype(jnp.bfloat16)
    bias = jnp.asarray(bias, jnp.float32).reshape(1, N)

    # --- tile selection (lane-dense padded outputs; block dims divide (8,128) or == full dim)
    if M <= tm:
        tm_e, Mp = M, M
    else:
        tm_e, Mp = tm, _rup(M, tm)
    if N <= tn:
        tn_e = Np = _rup(N, 128)
    else:
        tn_e, Np = tn, _rup(N, tn)
    if K <= tk:
        tk_e, Kp = K, K
    else:
        tk_e, Kp = tk, _rup(K, tk)
    nk = Kp // tk_e
    n_tiles_n = Np // tn_e

    # LN prologue is only fused when the whole reduction fits one K tile AND it is not
    # recomputed across many N tiles; otherwise pre-apply it once (single pass).
    if ln is not None and (nk > 1 or n_tiles_n > 2):
        x2 = pallas_layernorm(x2, ln[0], ln[1], eps=eps, out_dtype=jnp.bfloat16)
        ln = None

    if (Mp, Kp) != (M, K):
        x2 = jnp.pad(x2, ((0, Mp - M), (0, Kp - K)))
    if (Kp, Np) != (K, N):
        w = jnp.pad(w, ((0, Kp - K), (0, Np - N)))
    if Np != N:
        bias = jnp.pad(bias, ((0, 0), (0, Np - N)))

    has_res = residual is not None
    if has_res:
        r2 = residual.reshape(-1, N).astype(jnp.bfloat16)
        if (Mp, Np) != (M, N):
            r2 = jnp.pad(r2, ((0, Mp - M), (0, Np - N)))

    if nk == 1:
        args = [x2, w, bias]
        specs = [pl.BlockSpec((tm_e, tk_e), lambda i, j: (i, 0)),
                 pl.BlockSpec((tk_e, tn_e), lambda i, j: (0, j)),
                 pl.BlockSpec((1, tn_e), lambda i, j: (0, j))]
        if ln is not None:
            g = jnp.asarray(ln[0], jnp.float32).reshape(1, K)
            bb = jnp.asarray(ln[1], jnp.float32).reshape(1, K)
            args += [g, bb]
            specs += [pl.BlockSpec((1, tk_e), lambda i, j: (0, 0)),
                      pl.BlockSpec((1, tk_e), lambda i, j: (0, 0))]
        if has_res:
            args += [r2]
            specs += [pl.BlockSpec((tm_e, tn_e), lambda i, j: (i, j))]
        out = pl.pallas_call(
            functools.partial(_mm_k1_kernel, has_ln=ln is not None,
                              has_res=has_res, act=act, eps=eps),
            out_shape=jax.ShapeDtypeStruct((Mp, Np), out_dtype),
            grid=(Mp // tm_e, Np // tn_e),
            in_specs=specs,
            out_specs=pl.BlockSpec((tm_e, tn_e), lambda i, j: (i, j)),
            compiler_params=pltpu.CompilerParams(
                dimension_semantics=("parallel", "parallel"),
                vmem_limit_bytes=_VMEM_LIMIT),
        )(*args)
    else:
        args = [x2, w, bias]
        specs = [pl.BlockSpec((tm_e, tk_e), lambda i, j, k: (i, k)),
                 pl.BlockSpec((tk_e, tn_e), lambda i, j, k: (k, j)),
                 pl.BlockSpec((1, tn_e), lambda i, j, k: (0, j))]
        if has_res:
            args += [r2]
            specs += [pl.BlockSpec((tm_e, tn_e), lambda i, j, k: (i, j))]
        out = pl.pallas_call(
            functools.partial(_mm_kernel, nk=nk, has_res=has_res, act=act),
            out_shape=jax.ShapeDtypeStruct((Mp, Np), out_dtype),
            grid=(Mp // tm_e, Np // tn_e, nk),
            in_specs=specs,
            out_specs=pl.BlockSpec((tm_e, tn_e), lambda i, j, k: (i, j)),
            scratch_shapes=[pltpu.VMEM((tm_e, tn_e), jnp.float32)],
            compiler_params=pltpu.CompilerParams(
                dimension_semantics=("parallel", "parallel", "arbitrary"),
                vmem_limit_bytes=_VMEM_LIMIT),
        )(*args)

    if (Mp, Np) != (M, N):
        out = out[:M, :N]
    return out.reshape(*orig[:-1], N)


# ----------------------------------------------------------------------------
# Multi-head attention (all heads per grid step; q/k/v picked as last-dim blocks of
# the packed projection so no HBM slicing copies are needed)
# ----------------------------------------------------------------------------
def _sdpa_single_kernel(q_ref, k_ref, v_ref, o_ref, *, num_heads, dh, scale):
    # Fast path: all keys fit one tile -> plain softmax, no online-softmax bookkeeping.
    tq = q_ref.shape[1]
    skv = k_ref.shape[1]
    h = num_heads
    q = q_ref[0].reshape(tq, h, dh).swapaxes(0, 1)                 # (H, tq, dh) bf16
    k = k_ref[0].reshape(skv, h, dh).swapaxes(0, 1)
    v = v_ref[0].reshape(skv, h, dh).swapaxes(0, 1)

    s = jnp.einsum("hqd,hkd->hqk", q, k, preferred_element_type=jnp.float32)
    m = jnp.max(s, axis=-1, keepdims=True)
    p = jnp.exp((s - m) * scale)                                   # scale folded into exp arg
    l = jnp.sum(p, axis=-1, keepdims=True)
    pv = jnp.einsum("hqk,hkd->hqd", p.astype(jnp.bfloat16), v,
                    preferred_element_type=jnp.float32)
    out = pv * pl.reciprocal(l, approx=True)
    o_ref[0] = out.swapaxes(0, 1).reshape(tq, h * dh).astype(o_ref.dtype)


def _sdpa_multi_kernel(q_ref, k_ref, v_ref, o_ref, q_sc, m_sc, l_sc, acc_sc, *,
                       num_heads, dh, scale, sk_valid, tkv, nkv, masked):
    ki = pl.program_id(2)
    tq = q_ref.shape[1]
    h = num_heads

    @pl.when(ki == 0)
    def _():
        # Hoist the q relayout out of the kv loop.
        q_sc[...] = q_ref[0].reshape(tq, h, dh).swapaxes(0, 1)

    k = k_ref[0].reshape(tkv, h, dh).swapaxes(0, 1)
    v = v_ref[0].reshape(tkv, h, dh).swapaxes(0, 1)
    s = jnp.einsum("hqd,hkd->hqk", q_sc[...], k, preferred_element_type=jnp.float32)
    if masked:
        # Padding only ever appears in the final kv tile; the select is a no-op earlier.
        # (SEN never reaches nkv > 1, so this path is kept simple.)
        col = ki * tkv + lax.broadcasted_iota(jnp.int32, (1, 1, tkv), 2)
        s = jnp.where(col < sk_valid, s, -1e30)

    m_tile = jnp.max(s, axis=-1, keepdims=True)

    @pl.when(ki == 0)
    def _():
        p = jnp.exp((s - m_tile) * scale)
        m_sc[...] = m_tile
        l_sc[...] = jnp.sum(p, axis=-1, keepdims=True)
        acc_sc[...] = jnp.einsum("hqk,hkd->hqd", p.astype(jnp.bfloat16), v,
                                 preferred_element_type=jnp.float32)

    @pl.when(ki > 0)
    def _():
        m_prev = m_sc[...]
        m_new = jnp.maximum(m_prev, m_tile)
        alpha = jnp.exp((m_prev - m_new) * scale)
        p = jnp.exp((s - m_new) * scale)
        l_sc[...] = alpha * l_sc[...] + jnp.sum(p, axis=-1, keepdims=True)
        acc_sc[...] = alpha * acc_sc[...] + jnp.einsum(
            "hqk,hkd->hqd", p.astype(jnp.bfloat16), v,
            preferred_element_type=jnp.float32)
        m_sc[...] = m_new

    @pl.when(ki == nkv - 1)
    def _():
        out = acc_sc[...] * pl.reciprocal(l_sc[...], approx=True)
        o_ref[0] = out.swapaxes(0, 1).reshape(tq, h * dh).astype(o_ref.dtype)


def flash_sdpa(q_src, k_src, v_src, num_heads, d, *, q_blk=0, k_blk=0, v_blk=0,
               tq_target=512, tkv_target=256, kv_single_max=512):
    """softmax(Q K^T / sqrt(dh)) V per head.

    q_src:(B,Sq,*), k_src/v_src:(B,Sk,*).  The q/k/v slabs are selected as last-dim
    blocks of width d (block indices q_blk/k_blk/v_blk), so a packed QKV/KV projection
    can be read in place.  Returns (B, Sq, d) bf16.
    """
    b, sq, _ = q_src.shape
    sk = k_src.shape[1]
    dh = d // num_heads
    scale = 1.0 / math.sqrt(dh)

    q_src = q_src.astype(jnp.bfloat16)
    k_src = k_src.astype(jnp.bfloat16)
    v_src = v_src.astype(jnp.bfloat16)

    if sq <= tq_target:
        tq, sqp = sq, sq
    else:
        tq, sqp = tq_target, _rup(sq, tq_target)
    if sk <= kv_single_max:
        tkv, skp, nkv = sk, sk, 1
    else:
        tkv, skp = tkv_target, _rup(sk, tkv_target)
        nkv = skp // tkv

    if sqp != sq:
        q_src = jnp.pad(q_src, ((0, 0), (0, sqp - sq), (0, 0)))
    if skp != sk:
        k_src = jnp.pad(k_src, ((0, 0), (0, skp - sk), (0, 0)))
        v_src = jnp.pad(v_src, ((0, 0), (0, skp - sk), (0, 0)))

    if nkv == 1:
        out = pl.pallas_call(
            functools.partial(_sdpa_single_kernel, num_heads=num_heads, dh=dh, scale=scale),
            out_shape=jax.ShapeDtypeStruct((b, sqp, d), jnp.bfloat16),
            grid=(b, sqp // tq),
            in_specs=[
                pl.BlockSpec((1, tq, d), lambda bi, qi, qb=q_blk: (bi, qi, qb)),
                pl.BlockSpec((1, tkv, d), lambda bi, qi, kb=k_blk: (bi, 0, kb)),
                pl.BlockSpec((1, tkv, d), lambda bi, qi, vb=v_blk: (bi, 0, vb)),
            ],
            out_specs=pl.BlockSpec((1, tq, d), lambda bi, qi: (bi, qi, 0)),
            compiler_params=pltpu.CompilerParams(
                dimension_semantics=("parallel", "parallel"),
                vmem_limit_bytes=_VMEM_LIMIT),
        )(q_src, k_src, v_src)
    else:
        out = pl.pallas_call(
            functools.partial(_sdpa_multi_kernel, num_heads=num_heads, dh=dh, scale=scale,
                              sk_valid=sk, tkv=tkv, nkv=nkv, masked=(skp != sk)),
            out_shape=jax.ShapeDtypeStruct((b, sqp, d), jnp.bfloat16),
            grid=(b, sqp // tq, nkv),
            in_specs=[
                pl.BlockSpec((1, tq, d), lambda bi, qi, ki, qb=q_blk: (bi, qi, qb)),
                pl.BlockSpec((1, tkv, d), lambda bi, qi, ki, kb=k_blk: (bi, ki, kb)),
                pl.BlockSpec((1, tkv, d), lambda bi, qi, ki, vb=v_blk: (bi, ki, vb)),
            ],
            out_specs=pl.BlockSpec((1, tq, d), lambda bi, qi, ki: (bi, qi, 0)),
            scratch_shapes=[
                pltpu.VMEM((num_heads, tq, dh), jnp.bfloat16),   # hoisted q
                pltpu.VMEM((num_heads, tq, 1), jnp.float32),     # m
                pltpu.VMEM((num_heads, tq, 1), jnp.float32),     # l
                pltpu.VMEM((num_heads, tq, dh), jnp.float32),    # acc
            ],
            compiler_params=pltpu.CompilerParams(
                dimension_semantics=("parallel", "parallel", "arbitrary"),
                vmem_limit_bytes=_VMEM_LIMIT),
        )(q_src, k_src, v_src)

    if sqp != sq:
        out = out[:, :sq, :]
    return out


# ----------------------------------------------------------------------------
# Composite modules
# ----------------------------------------------------------------------------
def multihead_attention(p, q_in, kv_in, num_heads, *, ln_q=None, ln_kv=None,
                        residual=None, is_self=False):
    """nn.MultiheadAttention(batch_first) semantics with fused (LN+)QKV projection,
    flash SDPA over all heads, and the residual fused into the output projection."""
    d = q_in.shape[-1]
    w, bias = p["in_w"], p["in_b"]
    lane_ok = (d % 128 == 0)          # packed last-dim BlockSpec needs 128-aligned blocks
    if is_self:
        qkv = fused_linear(q_in, w, bias, ln=ln_q)                           # (B, S, 3D)
        if lane_ok:
            o = flash_sdpa(qkv, qkv, qkv, num_heads, d, q_blk=0, k_blk=1, v_blk=2)
        else:
            q, k, v = qkv[..., :d], qkv[..., d:2 * d], qkv[..., 2 * d:]
            o = flash_sdpa(q, k, v, num_heads, d)
    else:
        q = fused_linear(q_in, w[:, :d], bias[:, :d], ln=ln_q)
        kv = fused_linear(kv_in, w[:, d:], bias[:, d:], ln=ln_kv)            # (B, Sk, 2D)
        if lane_ok:
            o = flash_sdpa(q, kv, kv, num_heads, d, q_blk=0, k_blk=0, v_blk=1)
        else:
            k, v = kv[..., :d], kv[..., d:]
            o = flash_sdpa(q, k, v, num_heads, d)
    return fused_linear(o, p["out_w"], p["out_b"], residual=residual)


def residual_block(x, p, num_heads):
    ln1 = (p["ln_1"]["g"], p["ln_1"]["b"])
    x = multihead_attention(p["attn"], x, x, num_heads, ln_q=ln1, ln_kv=ln1,
                            residual=x, is_self=True)
    ln2 = (p["ln_2"]["g"], p["ln_2"]["b"])
    h = fused_linear(x, p["c_fc_w"], p["c_fc_b"], ln=ln2, act="quickgelu")
    x = fused_linear(h, p["c_proj_w"], p["c_proj_b"], residual=x)
    return x


def cross_former(p, q, k_and_v, num_heads):
    # torch: cross_attn(ln_pre_t(q), ln_pre_i(k), ln_pre_i(v)) -> transformer.
    # (The permute(1,0,2) round trips are pure layout; we stay batch-first.)
    # ln_post is fused into the first mlm_head linear by the caller.
    x = multihead_attention(p["cross_attn_mlm"], q, k_and_v, num_heads,
                            ln_q=(p["ln_pre_t"]["g"], p["ln_pre_t"]["b"]),
                            ln_kv=(p["ln_pre_i"]["g"], p["ln_pre_i"]["b"]))
    for blk in p["resblocks"]:
        x = residual_block(x, blk, num_heads)
    return x


def mlm_head(p, ln_post, x):
    h = fused_linear(x, p["dense_w"], p["dense_b"],
                     ln=(ln_post["g"], ln_post["b"]), act="quickgelu")
    return fused_linear(h, p["fc_w"], p["fc_b"],
                        ln=(p["ln"]["g"], p["ln"]["b"]), out_dtype=jnp.float32)


# ----------------------------------------------------------------------------
# Base model stubs (build_CLIP_from_openai_pretrained is external / pretrained)
# ----------------------------------------------------------------------------
def patchify(imgs, p):
    n, c, hh, ww = imgs.shape
    h, w = hh // p, ww // p
    x = imgs.reshape(n, c, h, p, w, p)
    x = jnp.einsum("nchpwq->nhwpqc", x)
    return x.reshape(n, h * w, p * p * c)


def encode_image_stub(p, images, cfg):
    # TODO(synk): the pretrained CLIP ViT image encoder is external; replaced by its
    # patch-embed conv (lowered to a Pallas matmul) + cls/pos embed + LN so that the
    # downstream shape/semantics of `image_feats` match (B, L+1, D).
    patches = patchify(images, cfg["patch_size"])
    x = fused_linear(patches, p["patch_w"], p["patch_b"])          # (B, L, D) bf16
    cls = jnp.broadcast_to(p["cls"], (x.shape[0], 1, x.shape[-1])).astype(jnp.float32)
    x = jnp.concatenate([cls, x.astype(jnp.float32)], axis=1) + p["vis_pos"]
    return pallas_layernorm(x, p["ln_vis"]["g"], p["ln_vis"]["b"])


def encode_text_stub(p, ids, cfg):
    # TODO(synk): pretrained CLIP text transformer replaced by embedding + pos + LN stub.
    x = jnp.take(p["tok_emb"], ids, axis=0) + p["txt_pos"]
    return pallas_layernorm(x, p["ln_txt"]["g"], p["ln_txt"]["b"])


# ----------------------------------------------------------------------------
# Parameter init (deterministic, follows the std's used in SEN.__init__)
# Matmul weights stored in bf16 (MXU operands); biases / LN / embeddings in f32.
# ----------------------------------------------------------------------------
def _normal(key, shape, std, dtype=jnp.bfloat16):
    return (std * jax.random.normal(key, shape, dtype=jnp.float32)).astype(dtype)


def _ln_params(d):
    return dict(g=jnp.ones((1, d), jnp.float32), b=jnp.zeros((1, d), jnp.float32))


def _attn_params(key, d, attn_std, proj_std):
    k1, k2 = jax.random.split(key)
    return dict(
        in_w=_normal(k1, (d, 3 * d), attn_std),
        in_b=jnp.zeros((1, 3 * d), jnp.float32),
        out_w=_normal(k2, (d, d), proj_std),
        out_b=jnp.zeros((1, d), jnp.float32),
    )


def _resblock_params(key, d, attn_std, proj_std, fc_std):
    k1, k2, k3 = jax.random.split(key, 3)
    return dict(
        ln_1=_ln_params(d),
        ln_2=_ln_params(d),
        attn=_attn_params(k1, d, attn_std, proj_std),
        c_fc_w=_normal(k2, (d, 4 * d), fc_std),
        c_fc_b=jnp.zeros((1, 4 * d), jnp.float32),
        c_proj_w=_normal(k3, (4 * d, d), proj_std),
        c_proj_b=jnp.zeros((1, d), jnp.float32),
    )


def init_sen_params(key, cfg):
    d = cfg["embed_dim"]
    depth = cfg["cmt_depth"]
    scale = d ** -0.5
    proj_std = scale * (2 * depth) ** -0.5
    attn_std = scale
    fc_std = (2 * d) ** -0.5
    patch_dim = cfg["patch_size"] ** 2 * 3
    num_patches = (cfg["img_size"][0] // cfg["patch_size"]) * (cfg["img_size"][1] // cfg["patch_size"])

    keys = jax.random.split(key, 16)
    resblocks = [
        _resblock_params(k, d, attn_std, proj_std, fc_std)
        for k in jax.random.split(keys[0], depth)
    ]
    params = dict(
        base=dict(
            patch_w=_normal(keys[1], (patch_dim, d), 0.02),
            patch_b=jnp.zeros((1, d), jnp.float32),
            cls=jnp.zeros((1, 1, d), jnp.float32),
            vis_pos=_normal(keys[2], (1, num_patches + 1, d), 0.02, jnp.float32),
            ln_vis=_ln_params(d),
            tok_emb=_normal(keys[3], (cfg["text_vocab"], d), 0.02, jnp.float32),
            txt_pos=_normal(keys[4], (1, cfg["text_len"], d), 0.02, jnp.float32),
            ln_txt=_ln_params(d),
        ),
        cls_w=_normal(keys[5], (d, cfg["num_classes"]), 0.001),
        cls_b=jnp.zeros((1, cfg["num_classes"]), jnp.float32),
        cross_attn_mlm=_attn_params(keys[6], d, attn_std, proj_std),
        resblocks=resblocks,
        ln_pre_t=_ln_params(d),
        ln_pre_i=_ln_params(d),
        ln_post=_ln_params(d),
        mlm_head=dict(
            dense_w=_normal(keys[7], (d, d), fc_std),
            dense_b=jnp.zeros((1, d), jnp.float32),
            ln=_ln_params(d),
            fc_w=_normal(keys[8], (d, cfg["vocab_size"]), proj_std),
            fc_b=jnp.zeros((1, cfg["vocab_size"]), jnp.float32),
        ),
    )
    return params


# ----------------------------------------------------------------------------
# Loss glue (objectives.compute_id / compute_mlm are standard cross-entropies)
# ----------------------------------------------------------------------------
def _softmax_ce(logits, labels):
    logz = jax.nn.logsumexp(logits, axis=-1)
    picked = jnp.take_along_axis(logits, labels[:, None], axis=-1)[:, 0]
    return logz - picked


# ----------------------------------------------------------------------------
# SEN.forward  (current_task = ['id', 'mlm'])
# ----------------------------------------------------------------------------
def sen_forward(params, batch, cfg):
    b = batch["images"].shape[0]
    num_heads = cfg["embed_dim"] // 64

    image_feats = encode_image_stub(params["base"], batch["images"], cfg)     # (B, L+1, D)
    text_feats = encode_text_stub(params["base"], batch["caption_ids"], cfg)  # (B, T, D)

    i_feats = image_feats[:, 0, :]
    eot = jnp.argmax(batch["caption_ids"], axis=-1)
    t_feats = text_feats[jnp.arange(b), eot]

    ret = {"temperature": jnp.asarray(1.0 / cfg["logit_scale"], jnp.float32)}

    # ---- 'id' ----  (torch: classifier(feats.half()).float(); both calls fused into one matmul)
    feats = jnp.concatenate([i_feats, t_feats], axis=0)                       # (2B, D)
    logits = fused_linear(feats, params["cls_w"], params["cls_b"], out_dtype=jnp.float32)
    image_logits, text_logits = logits[:b], logits[b:]
    pids = batch["pids"]
    id_loss = jnp.mean(_softmax_ce(image_logits, pids)) + jnp.mean(_softmax_ce(text_logits, pids))
    ret["id_loss"] = id_loss * cfg["id_loss_weight"]
    ret["img_acc"] = jnp.mean((jnp.argmax(image_logits, -1) == pids).astype(jnp.float32))
    ret["txt_acc"] = jnp.mean((jnp.argmax(text_logits, -1) == pids).astype(jnp.float32))

    # ---- 'mlm' ----
    mlm_feats = encode_text_stub(params["base"], batch["mlm_ids"], cfg)
    x = cross_former(params, mlm_feats, image_feats, num_heads)
    x = mlm_head(params["mlm_head"], params["ln_post"], x)                    # (B, T, vocab) f32
    scores = x.reshape(-1, cfg["vocab_size"])
    mlm_labels = batch["mlm_labels"].reshape(-1)
    ce = _softmax_ce(scores, mlm_labels)
    valid = (mlm_labels != 0).astype(jnp.float32)
    denom = jnp.maximum(jnp.sum(valid), 1.0)
    ret["mlm_loss"] = (jnp.sum(ce * valid) / denom) * cfg["mlm_loss_weight"]
    pred = jnp.argmax(scores, axis=1)
    ret["mlm_acc"] = jnp.sum((pred == mlm_labels).astype(jnp.float32) * valid) / denom

    # TODO(synk): 'itc'/'sdm'/'cmpm'/'tri'/'fuse'/'mae' branches depend on the external
    # `objectives` module, SDM pseudo labels, and the CLIP-MAE masking machinery; not exercised.
    return ret


# ----------------------------------------------------------------------------
if __name__ == "__main__":
    cfg = dict(
        embed_dim=128,           # heads = embed_dim // 64 = 2
        patch_size=16,
        img_size=(32, 32),       # grid (2, 2) -> 4 patches (+1 cls)
        vocab_size=192,          # mlm output vocab (exercises lane padding)
        text_vocab=100,          # stub token-embedding vocab
        text_len=8,
        num_classes=16,
        cmt_depth=2,
        logit_scale=1.0 / 0.02,  # args.temperature = 0.02
        id_loss_weight=1.0,
        mlm_loss_weight=1.0,
    )

    key = jax.random.PRNGKey(0)
    pkey, *dkeys = jax.random.split(key, 7)
    params = init_sen_params(pkey, cfg)

    B = 2
    images = jax.random.normal(dkeys[0], (B, 3, 32, 32), jnp.float32)          # NCHW
    caption_ids = jax.random.randint(dkeys[1], (B, cfg["text_len"]), 1, cfg["text_vocab"], dtype=jnp.int32)
    mlm_ids = jax.random.randint(dkeys[2], (B, cfg["text_len"]), 1, cfg["text_vocab"], dtype=jnp.int32)
    pids = jax.random.randint(dkeys[3], (B,), 0, cfg["num_classes"], dtype=jnp.int32)
    raw_labels = jax.random.randint(dkeys[4], (B, cfg["text_len"]), 1, cfg["vocab_size"], dtype=jnp.int32)
    keep = jax.random.uniform(dkeys[5], (B, cfg["text_len"])) < 0.5
    mlm_labels = jnp.where(keep, raw_labels, 0)

    batch = dict(images=images, caption_ids=caption_ids, mlm_ids=mlm_ids,
                 pids=pids, mlm_labels=mlm_labels)

    out = sen_forward(params, batch, cfg)
    jax.block_until_ready(out)

    # --- self-checks of the multi-tile paths not reached by the tiny model config ---
    ck = jax.random.split(jax.random.PRNGKey(1), 4)
    # multi-K matmul path (nk > 1, K and N padding)
    xa = jax.random.normal(ck[0], (16, 320), jnp.float32)
    wa = jax.random.normal(ck[1], (320, 96), jnp.float32) * 0.1
    ba = jnp.ones((1, 96), jnp.float32)
    ya = fused_linear(xa, wa, ba, out_dtype=jnp.float32, tk=128)
    yref = (xa.astype(jnp.bfloat16).astype(jnp.float32)
            @ wa.astype(jnp.bfloat16).astype(jnp.float32)) + ba
    assert float(jnp.max(jnp.abs(ya - yref))) < 0.15, "multi-K matmul mismatch"
    # multi-kv-tile flash attention path (online softmax + key-padding mask)
    qa = jax.random.normal(ck[2], (1, 8, 128), jnp.float32)
    ka = jax.random.normal(ck[3], (1, 600, 128), jnp.float32)
    va = jax.random.normal(ck[0], (1, 600, 128), jnp.float32)
    oa = flash_sdpa(qa, ka, va, 2, 128)

    def _ref_attn(q, k, v, h):
        b_, s_, d_ = q.shape
        dh_ = d_ // h
        qh = q.astype(jnp.bfloat16).astype(jnp.float32).reshape(b_, s_, h, dh_).transpose(0, 2, 1, 3)
        kh = k.astype(jnp.bfloat16).astype(jnp.float32).reshape(b_, -1, h, dh_).transpose(0, 2, 1, 3)
        vh = v.astype(jnp.bfloat16).astype(jnp.float32).reshape(b_, -1, h, dh_).transpose(0, 2, 1, 3)
        s = jnp.einsum("bhqd,bhkd->bhqk", qh, kh) / math.sqrt(dh_)
        pw = jax.nn.softmax(s, axis=-1)
        return jnp.einsum("bhqk,bhkd->bhqd", pw, vh).transpose(0, 2, 1, 3).reshape(b_, s_, d_)

    oref = _ref_attn(qa, ka, va, 2)
    assert float(jnp.max(jnp.abs(oa.astype(jnp.float32) - oref))) < 0.06, "multi-kv attention mismatch"

    print("KERNEL_OK")
</pallas_src>

<mosaic_0001>
module attributes {stable_mosaic.version = 11 : i64} {
  func.func @_mm_k1_kernel(%arg0: i32, %arg1: i32, %arg2: memref<8x768xbf16, #tpu.memory_space<vmem>>, %arg3: memref<768x128xbf16, #tpu.memory_space<vmem>>, %arg4: memref<1x128xf32, #tpu.memory_space<vmem>>, %arg5: memref<8x128xbf16, #tpu.memory_space<vmem>>) attributes {dimension_semantics = [#tpu.dimension_semantics<parallel>, #tpu.dimension_semantics<parallel>], iteration_bounds = array<i64: 1, 1>, scalar_prefetch = 0 : i64, scratch_operands = 0 : i64, tpu.core_type = #tpu.core_type<tc>, window_params = [{transform_indices = @transform_0, window_bounds = array<i64: 8, 768>}, {transform_indices = @transform_1, window_bounds = array<i64: 768, 128>}, {transform_indices = @transform_2, window_bounds = array<i64: 1, 128>}, {transform_indices = @transform_3, window_bounds = array<i64: 8, 128>}]} {
    %c0 = arith.constant 0 : index
    %c0_0 = arith.constant 0 : index
    %0 = vector.load %arg2[%c0, %c0_0] : memref<8x768xbf16, #tpu.memory_space<vmem>>, vector<8x768xbf16>
    %c0_1 = arith.constant 0 : index
    %c0_2 = arith.constant 0 : index
    %1 = vector.load %arg3[%c0_1, %c0_2] : memref<768x128xbf16, #tpu.memory_space<vmem>>, vector<768x128xbf16>
    %cst = arith.constant dense<0.000000e+00> : vector<8x128xf32>
    %2 = tpu.matmul %0, %1, %cst {dimension_numbers = #tpu.dot_dimension_numbers<[1], [0], [0], [1], [0, 0, 1, 1], [], []>} : vector<8x768xbf16>, vector<768x128xbf16>, vector<8x128xf32> -> vector<8x128xf32>
    %c0_3 = arith.constant 0 : index
    %c0_4 = arith.constant 0 : index
    %3 = vector.load %arg4[%c0_3, %c0_4] : memref<1x128xf32, #tpu.memory_space<vmem>>, vector<1x128xf32>
    %4 = vector.broadcast %3 : vector<1x128xf32> to vector<8x128xf32>
    %5 = arith.addf %2, %4 : vector<8x128xf32>
    %6 = arith.truncf %5 : vector<8x128xf32> to vector<8x128xbf16>
    %c0_5 = arith.constant 0 : index
    %c0_6 = arith.constant 0 : index
    %7 = vector.load %arg5[%c0_5, %c0_6] : memref<8x128xbf16, #tpu.memory_space<vmem>>, vector<8x128xbf16>
    tpu.vector_store %arg5[%c0_5, %c0_6], %6 {strides = array<i32>} : memref<8x128xbf16, #tpu.memory_space<vmem>>, vector<8x128xbf16>,
    return
  }
  func.func @transform_0(%arg0: i32, %arg1: i32) -> (i32, i32) {
    %c0_i32 = arith.constant 0 : i32
    %c0_i32_0 = arith.constant 0 : i32
    return %arg0, %c0_i32 : i32, i32
  }
  func.func @transform_1(%arg0: i32, %arg1: i32) -> (i32, i32) {
    %c0_i32 = arith.constant 0 : i32
    %c0_i32_0 = arith.constant 0 : i32
    return %c0_i32, %arg1 : i32, i32
  }
  func.func @transform_2(%arg0: i32, %arg1: i32) -> (i32, i32) {
    %c0_i32 = arith.constant 0 : i32
    %c0_i32_0 = arith.constant 0 : i32
    return %c0_i32, %arg1 : i32, i32
  }
  func.func @transform_3(%arg0: i32, %arg1: i32) -> (i32, i32) {
    %c0_i32 = arith.constant 0 : i32
    return %arg0, %arg1 : i32, i32
  }
}

</mosaic_0001>

<llo_original>
// kernel: tpu_custom_call.1
$region0: #{tpu_custom_call.1}
  #allocation0 [shape = 'u32[]', space=smem, size = 0x4, offset = 0x4, fixed_abs, tag = 'smem constant byte address 0x4 - core index']
  #allocation1 [shape = 'u32[144,128]{1,0:T(1,128)}', space=vmem, size = 0x12000, scoped, tag = 'internal scratch']
  %s0 = inlined_call_operand.hbm [shape: bf16[8,768], index: 0, kind: input, shape index: {}]
  %s1 = inlined_call_operand.hbm [shape: bf16[768,128], index: 1, kind: input, shape index: {}]
  %s2 = inlined_call_operand.vmem [shape: f32[1,128], index: 2, kind: input, shape index: {}]
  %s3 = inlined_call_operand.hbm [shape: bf16[8,128], index: 3, kind: output, shape index: {}]
  %s4 = sld [smem:[#allocation0]]
  $region30: #{tpu_custom_call.1} parent=0
    _
  %s6 = ssub.s32 1, %s4
  %s7 = scalar_select 0, %s6, %s4
  $region1: #{tpu_custom_call.1} parent=0
    #allocation2 [shape = 'u8[12288]{0}', space=vmem, size = 0x3000, scoped, tag = 'input window, operand 0, single buffered']
    #allocation3 [shape = 's32[1]{0}', space=sflag, size = 0x4, scoped, tag = 'scoped memory for tpu_custom_call.1']
    #allocation4 [shape = 's32[1]{0}', space=sflag, size = 0x4, scoped, tag = 'scoped memory for tpu_custom_call.1']
    #allocation5 [shape = 'u8[196608]{0}', space=vmem, size = 0x30000, scoped, tag = 'input window, operand 1, single buffered']
    #allocation6 [shape = 's32[1]{0}', space=sflag, size = 0x4, scoped, tag = 'scoped memory for tpu_custom_call.1']
    #allocation7 [shape = 'u8[2048]{0}', space=vmem, size = 0x800, scoped, tag = 'output window, operand 0, single buffered']
    %8 = vsyncpa [#allocation3], 0
    %9 = vsyncpa [#allocation6], 0
    %10 = vsyncpa [#allocation4], 0
    // Predicated region
    $region2: #{tpu_custom_call.1} parent=1 // pred_check
      _
    $region3: #{tpu_custom_call.1} parent=1 // pred_check_branch
      %12 = sbr.rel (0) target = $region5
    $region4: #{tpu_custom_call.1} parent=1 // pred_region
      %s14 = ssub.s32 384, 384
      %15 = vsyncadd [#allocation3], %s14
      %s17 = sshll.u32 [#allocation2], 4
      %s18 = int_to_ptr.vmem [resolvable:$true] %s17
      %20 = dma.hbm_to_vmem [thread:$0]  %s0, 384, %s18, [#allocation3]
    $region5: #{tpu_custom_call.1} parent=1 // pred_fallthru
      _
    // Predicated region
    $region6: #{tpu_custom_call.1} parent=1 // pred_check
      _
    $region7: #{tpu_custom_call.1} parent=1 // pred_check_branch
      %22 = sbr.rel (0) target = $region9
    $region8: #{tpu_custom_call.1} parent=1 // pred_region
      %s24 = ssub.s32 6144, 6144
      %25 = vsyncadd [#allocation6], %s24
      %s26 = sshll.u32 [#allocation5], 4
      %s27 = int_to_ptr.vmem [resolvable:$true] %s26
      %32 = dma.hbm_to_vmem [thread:$0]  %s1, 6144, %s27, [#allocation6], 64, 64, 4
    $region9: #{tpu_custom_call.1} parent=1 // pred_fallthru
      _
    // Predicated region
    $region10: #{tpu_custom_call.1} parent=1 // pred_check
      _
    $region11: #{tpu_custom_call.1} parent=1 // pred_check_branch
      %34 = sbr.rel (0) target = $region13
    $region12: #{tpu_custom_call.1} parent=1 // pred_region
      _
    $region13: #{tpu_custom_call.1} parent=1 // pred_fallthru
      _
    // Predicated region
    $region14: #{tpu_custom_call.1} parent=1 // pred_check
      _
    $region15: #{tpu_custom_call.1} parent=1 // pred_check_branch
      %36 = sbr.rel (0) target = $region17
    $region16: #{tpu_custom_call.1} parent=1 // pred_region
      %37 = dma.done [#allocation3], 384
    $region17: #{tpu_custom_call.1} parent=1 // pred_fallthru
      _
    // Predicated region
    $region18: #{tpu_custom_call.1} parent=1 // pred_check
      _
    $region19: #{tpu_custom_call.1} parent=1 // pred_check_branch
      %39 = sbr.rel (0) target = $region21
    $region20: #{tpu_custom_call.1} parent=1 // pred_region
      %40 = dma.done [#allocation6], 6144
    $region21: #{tpu_custom_call.1} parent=1 // pred_fallthru
      _
    %v42 = vld [vmem:[#allocation2] sm:$0xff]
    %v43 = vld [vmem:[#allocation2 + $0x8] sm:$0xff]
    %v44 = vld [vmem:[#allocation2 + $0x10] sm:$0xff]
    %v45 = vld [vmem:[#allocation5] sm:$0xf]
    %v46 = vld [vmem:[#allocation5 + $0x4] sm:$0xf]
    %v47 = vld [vmem:[#allocation5 + $0x8] sm:$0xf]
    %v48 = vld [vmem:[#allocation5 + $0xc] sm:$0xf]
    %v49 = vld [vmem:[#allocation5 + $0x10] sm:$0xf]
    %v50 = vld [vmem:[#allocation5 + $0x14] sm:$0xf]
    %v51 = vld [vmem:[#allocation5 + $0x18] sm:$0xf]
    %v52 = vld [vmem:[#allocation5 + $0x1c] sm:$0xf]
    %v53 = vld [vmem:[#allocation5 + $0x20] sm:$0xf]
    %v54 = vld [vmem:[#allocation5 + $0x24] sm:$0xf]
    %v55 = vld [vmem:[#allocation5 + $0x28] sm:$0xf]
    %v56 = vld [vmem:[#allocation5 + $0x2c] sm:$0xf]
    %v57 = vld [vmem:[#allocation5 + $0x30] sm:$0xf]
    %v58 = vld [vmem:[#allocation5 + $0x34] sm:$0xf]
    %v59 = vld [vmem:[#allocation5 + $0x38] sm:$0xf]
    %v60 = vld [vmem:[#allocation5 + $0x3c] sm:$0xf]
    %v61 = vld [vmem:[#allocation5 + $0x40] sm:$0xf]
    %v62 = vld [vmem:[#allocation5 + $0x44] sm:$0xf]
    %v63 = vld [vmem:[#allocation5 + $0x48] sm:$0xf]
    %v64 = vld [vmem:[#allocation5 + $0x4c] sm:$0xf]
    %v65 = vld [vmem:[#allocation5 + $0x50] sm:$0xf]
    %v66 = vld [vmem:[#allocation5 + $0x54] sm:$0xf]
    %v67 = vld [vmem:[#allocation5 + $0x58] sm:$0xf]
    %v68 = vld [vmem:[#allocation5 + $0x5c] sm:$0xf]
    %v69 = vld [vmem:[#allocation5 + $0x60] sm:$0xf]
    %v70 = vld [vmem:[#allocation5 + $0x64] sm:$0xf]
    %v71 = vld [vmem:[#allocation5 + $0x68] sm:$0xf]
    %v72 = vld [vmem:[#allocation5 + $0x6c] sm:$0xf]
    %v73 = vld [vmem:[#allocation5 + $0x70] sm:$0xf]
    %v74 = vld [vmem:[#allocation5 + $0x74] sm:$0xf]
    %v75 = vld [vmem:[#allocation5 + $0x78] sm:$0xf]
    %v76 = vld [vmem:[#allocation5 + $0x7c] sm:$0xf]
    %v77 = vld [vmem:[#allocation5 + $0x80] sm:$0xf]
    %v78 = vld [vmem:[#allocation5 + $0x84] sm:$0xf]
    %v79 = vld [vmem:[#allocation5 + $0x88] sm:$0xf]
    %v80 = vld [vmem:[#allocation5 + $0x8c] sm:$0xf]
    %v81 = vld [vmem:[#allocation5 + $0x90] sm:$0xf]
    %v82 = vld [vmem:[#allocation5 + $0x94] sm:$0xf]
    %v83 = vld [vmem:[#allocation5 + $0x98] sm:$0xf]
    %v84 = vld [vmem:[#allocation5 + $0x9c] sm:$0xf]
    %v85 = vld [vmem:[#allocation5 + $0xa0] sm:$0xf]
    %v86 = vld [vmem:[#allocation5 + $0xa4] sm:$0xf]
    %v87 = vld [vmem:[#allocation5 + $0xa8] sm:$0xf]
    %v88 = vld [vmem:[#allocation5 + $0xac] sm:$0xf]
    %v89 = vld [vmem:[#allocation5 + $0xb0] sm:$0xf]
    %v90 = vld [vmem:[#allocation5 + $0xb4] sm:$0xf]
    %v91 = vld [vmem:[#allocation5 + $0xb8] sm:$0xf]
    %v92 = vld [vmem:[#allocation5 + $0xbc] sm:$0xf]
    %v93 = vld [vmem:[#allocation5 + $0xc0] sm:$0xf]
    %v94 = vld [vmem:[#allocation5 + $0xc4] sm:$0xf]
    %v95 = vld [vmem:[#allocation5 + $0xc8] sm:$0xf]
    %v96 = vld [vmem:[#allocation5 + $0xcc] sm:$0xf]
    %v97 = vld [vmem:[#allocation5 + $0xd0] sm:$0xf]
    %v98 = vld [vmem:[#allocation5 + $0xd4] sm:$0xf]
    %v99 = vld [vmem:[#allocation5 + $0xd8] sm:$0xf]
    %v100 = vld [vmem:[#allocation5 + $0xdc] sm:$0xf]
    %v101 = vld [vmem:[#allocation5 + $0xe0] sm:$0xf]
    %v102 = vld [vmem:[#allocation5 + $0xe4] sm:$0xf]
    %v103 = vld [vmem:[#allocation5 + $0xe8] sm:$0xf]
    %v104 = vld [vmem:[#allocation5 + $0xec] sm:$0xf]
    %v105 = vld [vmem:[#allocation5 + $0xf0] sm:$0xf]
    %v106 = vld [vmem:[#allocation5 + $0xf4] sm:$0xf]
    %v107 = vld [vmem:[#allocation5 + $0xf8] sm:$0xf]
    %v108 = vld [vmem:[#allocation5 + $0xfc] sm:$0xf]
    %v109 = vld [vmem:[#allocation5 + $0x100] sm:$0xf]
    %v110 = vld [vmem:[#allocation5 + $0x104] sm:$0xf]
    %v111 = vld [vmem:[#allocation5 + $0x108] sm:$0xf]
    %v112 = vld [vmem:[#allocation5 + $0x10c] sm:$0xf]
    %v113 = vld [vmem:[#allocation5 + $0x110] sm:$0xf]
    %v114 = vld [vmem:[#allocation5 + $0x114] sm:$0xf]
    %v115 = vld [vmem:[#allocation5 + $0x118] sm:$0xf]
    %v116 = vld [vmem:[#allocation5 + $0x11c] sm:$0xf]
    %v117 = vld [vmem:[#allocation5 + $0x120] sm:$0xf]
    %v118 = vld [vmem:[#allocation5 + $0x124] sm:$0xf]
    %v119 = vld [vmem:[#allocation5 + $0x128] sm:$0xf]
    %v120 = vld [vmem:[#allocation5 + $0x12c] sm:$0xf]
    %v121 = vld [vmem:[#allocation5 + $0x130] sm:$0xf]
    %v122 = vld [vmem:[#allocation5 + $0x134] sm:$0xf]
    %v123 = vld [vmem:[#allocation5 + $0x138] sm:$0xf]
    %v124 = vld [vmem:[#allocation5 + $0x13c] sm:$0xf]
    %v125 = vld [vmem:[#allocation5 + $0x140] sm:$0xf]
    %v126 = vld [vmem:[#allocation5 + $0x144] sm:$0xf]
    %v127 = vld [vmem:[#allocation5 + $0x148] sm:$0xf]
    %v128 = vld [vmem:[#allocation5 + $0x14c] sm:$0xf]
    %v129 = vld [vmem:[#allocation5 + $0x150] sm:$0xf]
    %v130 = vld [vmem:[#allocation5 + $0x154] sm:$0xf]
    %v131 = vld [vmem:[#allocation5 + $0x158] sm:$0xf]
    %v132 = vld [vmem:[#allocation5 + $0x15c] sm:$0xf]
    %v133 = vld [vmem:[#allocation5 + $0x160] sm:$0xf]
    %v134 = vld [vmem:[#allocation5 + $0x164] sm:$0xf]
    %v135 = vld [vmem:[#allocation5 + $0x168] sm:$0xf]
    %v136 = vld [vmem:[#allocation5 + $0x16c] sm:$0xf]
    %v137 = vld [vmem:[#allocation5 + $0x170] sm:$0xf]
    %v138 = vld [vmem:[#allocation5 + $0x174] sm:$0xf]
    %v139 = vld [vmem:[#allocation5 + $0x178] sm:$0xf]
    %v140 = vld [vmem:[#allocation5 + $0x17c] sm:$0xf]
    %v141 = vld [vmem:[%s2] sm:$0x1]
    %v143 = vlaneseq
    %v144 = vshrl.u32 %v143, 7
    %v145 = vsub.s32 0, %v144
    %v146 = vrot.slane %v141, %v145
    %v151 = vunpack.c.l.b16 %v42
    %v152 = vunpack.c.h.b16 %v42
    %v153 = vunpack.c.l.b16 %v43
    %v154 = vunpack.c.h.b16 %v43
    %v155 = vunpack.c.l.b16 %v44
    %v156 = vunpack.c.h.b16 %v44
    %v157 = vpack.c.b16 %v151, %v151
    %v158 = vpack.c.b16 %v152, %v152
    %v159 = vpack.c.b16 %v153, %v153
    %v160 = vpack.c.b16 %v154, %v154
    %v161 = vpack.c.b16 %v155, %v155
    %v162 = vpack.c.b16 %v156, %v156
    %v265 = vunpack.c.l.b16 %v45
    %v266 = vunpack.c.l.b16 %v46
    %v267 = vunpack.c.l.b16 %v47
    %v268 = vunpack.c.l.b16 %v48
    %v269 = vunpack.c.l.b16 %v49
    %v270 = vunpack.c.l.b16 %v50
    %v271 = vunpack.c.l.b16 %v51
    %v272 = vunpack.c.l.b16 %v52
    %v273 = vunpack.c.l.b16 %v53
    %v274 = vunpack.c.l.b16 %v54
    %v275 = vunpack.c.l.b16 %v55
    %v276 = vunpack.c.l.b16 %v56
    %v277 = vunpack.c.l.b16 %v57
    %v278 = vunpack.c.l.b16 %v58
    %v279 = vunpack.c.l.b16 %v59
    %v280 = vunpack.c.l.b16 %v60
    %v281 = vunpack.c.l.b16 %v61
    %v282 = vunpack.c.l.b16 %v62
    %v283 = vunpack.c.l.b16 %v63
    %v284 = vunpack.c.l.b16 %v64
    %v285 = vunpack.c.l.b16 %v65
    %v286 = vunpack.c.l.b16 %v66
    %v287 = vunpack.c.l.b16 %v67
    %v288 = vunpack.c.l.b16 %v68
    %v289 = vunpack.c.l.b16 %v69
    %v290 = vunpack.c.l.b16 %v70
    %v291 = vunpack.c.l.b16 %v71
    %v292 = vunpack.c.l.b16 %v72
    %v293 = vunpack.c.l.b16 %v73
    %v294 = vunpack.c.l.b16 %v74
    %v295 = vunpack.c.l.b16 %v75
    %v296 = vunpack.c.l.b16 %v76
    %v297 = vunpack.c.l.b16 %v77
    %v298 = vunpack.c.l.b16 %v78
    %v299 = vunpack.c.l.b16 %v79
    %v300 = vunpack.c.l.b16 %v80
    %v301 = vunpack.c.l.b16 %v81
    %v302 = vunpack.c.l.b16 %v82
    %v303 = vunpack.c.l.b16 %v83
    %v304 = vunpack.c.l.b16 %v84
    %v305 = vunpack.c.l.b16 %v85
    %v306 = vunpack.c.l.b16 %v86
    %v307 = vunpack.c.l.b16 %v87
    %v308 = vunpack.c.l.b16 %v88
    %v309 = vunpack.c.l.b16 %v89
    %v310 = vunpack.c.l.b16 %v90
    %v311 = vunpack.c.l.b16 %v91
    %v312 = vunpack.c.l.b16 %v92
    %v313 = vunpack.c.l.b16 %v93
    %v314 = vunpack.c.l.b16 %v94
    %v315 = vunpack.c.l.b16 %v95
    %v316 = vunpack.c.l.b16 %v96
    %v317 = vunpack.c.l.b16 %v97
    %v318 = vunpack.c.l.b16 %v98
    %v319 = vunpack.c.l.b16 %v99
    %v320 = vunpack.c.l.b16 %v100
    %v321 = vunpack.c.l.b16 %v101
    %v322 = vunpack.c.l.b16 %v102
    %v323 = vunpack.c.l.b16 %v103
    %v324 = vunpack.c.l.b16 %v104
    %v325 = vunpack.c.l.b16 %v105
    %v326 = vunpack.c.l.b16 %v106
    %v327 = vunpack.c.l.b16 %v107
    %v328 = vunpack.c.l.b16 %v108
    %v329 = vunpack.c.l.b16 %v109
    %v330 = vunpack.c.l.b16 %v110
    %v331 = vunpack.c.l.b16 %v111
    %v332 = vunpack.c.l.b16 %v112
    %v333 = vunpack.c.l.b16 %v113
    %v334 = vunpack.c.l.b16 %v114
    %v335 = vunpack.c.l.b16 %v115
    %v336 = vunpack.c.l.b16 %v116
    %v337 = vunpack.c.l.b16 %v117
    %v338 = vunpack.c.l.b16 %v118
    %v339 = vunpack.c.l.b16 %v119
    %v340 = vunpack.c.l.b16 %v120
    %v341 = vunpack.c.l.b16 %v121
    %v342 = vunpack.c.l.b16 %v122
    %v343 = vunpack.c.l.b16 %v123
    %v344 = vunpack.c.l.b16 %v124
    %v345 = vunpack.c.l.b16 %v125
    %v346 = vunpack.c.l.b16 %v126
    %v347 = vunpack.c.l.b16 %v127
    %v348 = vunpack.c.l.b16 %v128
    %v349 = vunpack.c.l.b16 %v129
    %v350 = vunpack.c.l.b16 %v130
    %v351 = vunpack.c.l.b16 %v131
    %v352 = vunpack.c.l.b16 %v132
    %v353 = vunpack.c.l.b16 %v133
    %v354 = vunpack.c.l.b16 %v134
    %v355 = vunpack.c.l.b16 %v135
    %v356 = vunpack.c.l.b16 %v136
    %v357 = vunpack.c.l.b16 %v137
    %v358 = vunpack.c.l.b16 %v138
    %v359 = vunpack.c.l.b16 %v139
    %v360 = vunpack.c.l.b16 %v140
    %v361 = vpack.c.b16 %v266, %v265
    %v362 = vpack.c.b16 %v268, %v267
    %v363 = vpack.c.b16 %v270, %v269
    %v364 = vpack.c.b16 %v272, %v271
    %v365 = vpack.c.b16 %v274, %v273
    %v366 = vpack.c.b16 %v276, %v275
    %v367 = vpack.c.b16 %v278, %v277
    %v368 = vpack.c.b16 %v280, %v279
    %v369 = vpack.c.b16 %v282, %v281
    %v370 = vpack.c.b16 %v284, %v283
    %v371 = vpack.c.b16 %v286, %v285
    %v372 = vpack.c.b16 %v288, %v287
    %v373 = vpack.c.b16 %v290, %v289
    %v374 = vpack.c.b16 %v292, %v291
    %v375 = vpack.c.b16 %v294, %v293
    %v376 = vpack.c.b16 %v296, %v295
    %v377 = vpack.c.b16 %v298, %v297
    %v378 = vpack.c.b16 %v300, %v299
    %v379 = vpack.c.b16 %v302, %v301
    %v380 = vpack.c.b16 %v304, %v303
    %v381 = vpack.c.b16 %v306, %v305
    %v382 = vpack.c.b16 %v308, %v307
    %v383 = vpack.c.b16 %v310, %v309
    %v384 = vpack.c.b16 %v312, %v311
    %v385 = vpack.c.b16 %v314, %v313
    %v386 = vpack.c.b16 %v316, %v315
    %v387 = vpack.c.b16 %v318, %v317
    %v388 = vpack.c.b16 %v320, %v319
    %v389 = vpack.c.b16 %v322, %v321
    %v390 = vpack.c.b16 %v324, %v323
    %v391 = vpack.c.b16 %v326, %v325
    %v392 = vpack.c.b16 %v328, %v327
    %v393 = vpack.c.b16 %v330, %v329
    %v394 = vpack.c.b16 %v332, %v331
    %v395 = vpack.c.b16 %v334, %v333
    %v396 = vpack.c.b16 %v336, %v335
    %v397 = vpack.c.b16 %v338, %v337
    %v398 = vpack.c.b16 %v340, %v339
    %v399 = vpack.c.b16 %v342, %v341
    %v400 = vpack.c.b16 %v344, %v343
    %v401 = vpack.c.b16 %v346, %v345
    %v402 = vpack.c.b16 %v348, %v347
    %v403 = vpack.c.b16 %v350, %v349
    %v404 = vpack.c.b16 %v352, %v351
    %v405 = vpack.c.b16 %v354, %v353
    %v406 = vpack.c.b16 %v356, %v355
    %v407 = vpack.c.b16 %v358, %v357
    %v408 = vpack.c.b16 %v360, %v359
    %457 = vmatprep.subr.bf16.mxu0 0
    %458 = vmatpush1.bf16.msra.mxu0 %v368
    %459 = vmatprep.subr.bf16.mxu0 0
    %460 = vmatpush1.bf16.msra.mxu0 %v367
    %461 = vmatprep.subr.bf16.mxu0 0
    %462 = vmatpush1.bf16.msra.mxu0 %v366
    %463 = vmatprep.subr.bf16.mxu0 0
    %464 = vmatpush1.bf16.msra.mxu0 %v365
    %465 = vmatprep.subr.bf16.mxu0 0
    %466 = vmatpush1.bf16.msra.mxu0 %v364
    %467 = vmatprep.subr.bf16.mxu0 0
    %468 = vmatpush1.bf16.msra.mxu0 %v363
    %469 = vmatprep.subr.bf16.mxu0 0
    %470 = vmatpush1.bf16.msra.mxu0 %v362
    %471 = vmatprep.subr.bf16.mxu0 0
    %472 = vmatpush1.bf16.msra.mxu0 %v361
    %473 = vmatprep.subr.bf16.mxu0 0
    %474 = vmatpush2.bf16.msra.mxu0 %v376
    %475 = vmatprep.subr.bf16.mxu0 0
    %476 = vmatpush2.bf16.msra.mxu0 %v375
    %477 = vmatprep.subr.bf16.mxu0 0
    %478 = vmatpush2.bf16.msra.mxu0 %v374
    %479 = vmatprep.subr.bf16.mxu0 0
    %480 = vmatpush2.bf16.msra.mxu0 %v373
    %481 = vmatprep.subr.bf16.mxu0 0
    %482 = vmatpush2.bf16.msra.mxu0 %v372
    %483 = vmatprep.subr.bf16.mxu0 0
    %484 = vmatpush2.bf16.msra.mxu0 %v371
    %485 = vmatprep.subr.bf16.mxu0 0
    %486 = vmatpush2.bf16.msra.mxu0 %v370
    %487 = vmatprep.subr.bf16.mxu0 0
    %488 = vmatpush2.bf16.msra.mxu0 %v369
    %489 = vmatprep.mubr.bf16.mxu0 %v158
    %490 = vmatmul.mubr.bf16.gmra.mxu0 %v157
    %v491 = vpop.f32.mrf.mxu0
    %v492 = vadd.f32 %v146, %v491
    %v493 = vpop.f32.mrf.mxu0
    %v494 = vpop.f32.mrf.mxu0
    %v495 = vpop.f32.mrf.mxu0
    %496 = vdwg.mxu0
    %497 = vmatprep.subr.bf16.mxu0 0
    %498 = vmatpush1.bf16.msra.mxu0 %v384
    %499 = vmatprep.subr.bf16.mxu0 0
    %500 = vmatpush1.bf16.msra.mxu0 %v383
    %501 = vmatprep.subr.bf16.mxu0 0
    %502 = vmatpush1.bf16.msra.mxu0 %v382
    %503 = vmatprep.subr.bf16.mxu0 0
    %504 = vmatpush1.bf16.msra.mxu0 %v381
    %505 = vmatprep.subr.bf16.mxu0 0
    %506 = vmatpush1.bf16.msra.mxu0 %v380
    %507 = vmatprep.subr.bf16.mxu0 0
    %508 = vmatpush1.bf16.msra.mxu0 %v379
    %509 = vmatprep.subr.bf16.mxu0 0
    %510 = vmatpush1.bf16.msra.mxu0 %v378
    %511 = vmatprep.subr.bf16.mxu0 0
    %512 = vmatpush1.bf16.msra.mxu0 %v377
    %513 = vmatprep.subr.bf16.mxu0 0
    %514 = vmatpush2.bf16.msra.mxu0 %v392
    %515 = vmatprep.subr.bf16.mxu0 0
    %516 = vmatpush2.bf16.msra.mxu0 %v391
    %517 = vmatprep.subr.bf16.mxu0 0
    %518 = vmatpush2.bf16.msra.mxu0 %v390
    %519 = vmatprep.subr.bf16.mxu0 0
    %520 = vmatpush2.bf16.msra.mxu0 %v389
    %521 = vmatprep.subr.bf16.mxu0 0
    %522 = vmatpush2.bf16.msra.mxu0 %v388
    %523 = vmatprep.subr.bf16.mxu0 0
    %524 = vmatpush2.bf16.msra.mxu0 %v387
    %525 = vmatprep.subr.bf16.mxu0 0
    %526 = vmatpush2.bf16.msra.mxu0 %v386
    %527 = vmatprep.subr.bf16.mxu0 0
    %528 = vmatpush2.bf16.msra.mxu0 %v385
    %529 = vmatprep.mubr.bf16.mxu0 %v160
    %530 = vmatmul.mubr.bf16.gmra.mxu0 %v159
    %v531 = vpop.f32.mrf.mxu0
    %v532 = vadd.f32 %v492, %v531
    %v533 = vpop.f32.mrf.mxu0
    %v534 = vpop.f32.mrf.mxu0
    %v535 = vpop.f32.mrf.mxu0
    %536 = vdwg.mxu0
    %537 = vmatprep.subr.bf16.mxu0 0
    %538 = vmatpush1.bf16.msra.mxu0 %v400
    %539 = vmatprep.subr.bf16.mxu0 0
    %540 = vmatpush1.bf16.msra.mxu0 %v399
    %541 = vmatprep.subr.bf16.mxu0 0
    %542 = vmatpush1.bf16.msra.mxu0 %v398
    %543 = vmatprep.subr.bf16.mxu0 0
    %544 = vmatpush1.bf16.msra.mxu0 %v397
    %545 = vmatprep.subr.bf16.mxu0 0
    %546 = vmatpush1.bf16.msra.mxu0 %v396
    %547 = vmatprep.subr.bf16.mxu0 0
    %548 = vmatpush1.bf16.msra.mxu0 %v395
    %549 = vmatprep.subr.bf16.mxu0 0
    %550 = vmatpush1.bf16.msra.mxu0 %v394
    %551 = vmatprep.subr.bf16.mxu0 0
    %552 = vmatpush1.bf16.msra.mxu0 %v393
    %553 = vmatprep.subr.bf16.mxu0 0
    %554 = vmatpush2.bf16.msra.mxu0 %v408
    %555 = vmatprep.subr.bf16.mxu0 0
    %556 = vmatpush2.bf16.msra.mxu0 %v407
    %557 = vmatprep.subr.bf16.mxu0 0
    %558 = vmatpush2.bf16.msra.mxu0 %v406
    %559 = vmatprep.subr.bf16.mxu0 0
    %560 = vmatpush2.bf16.msra.mxu0 %v405
    %561 = vmatprep.subr.bf16.mxu0 0
    %562 = vmatpush2.bf16.msra.mxu0 %v404
    %563 = vmatprep.subr.bf16.mxu0 0
    %564 = vmatpush2.bf16.msra.mxu0 %v403
    %565 = vmatprep.subr.bf16.mxu0 0
    %566 = vmatpush2.bf16.msra.mxu0 %v402
    %567 = vmatprep.subr.bf16.mxu0 0
    %568 = vmatpush2.bf16.msra.mxu0 %v401
    %569 = vmatprep.mubr.bf16.mxu0 %v162
    %570 = vmatmul.mubr.bf16.gmra.mxu0 %v161
    %v571 = vpop.f32.mrf.mxu0
    %v572 = vadd.f32 %v532, %v571
    %v573 = vpop.f32.mrf.mxu0
    %v574 = vpop.f32.mrf.mxu0
    %v575 = vpop.f32.mrf.mxu0
    %576 = vdwg.mxu0
    %v577 = vpack.c.bf16 %v572, %v572
    %578 = vst [vmem:[#allocation7] sm:$0xf] %v577
    // Predicated region
    $region22: #{tpu_custom_call.1} parent=1 // pred_check
      _
    $region23: #{tpu_custom_call.1} parent=1 // pred_check_branch
      %580 = sbr.rel (0) target = $region25
    $region24: #{tpu_custom_call.1} parent=1 // pred_region
      %s582 = ssub.s32 64, 64
      %583 = vsyncadd [#allocation4], %s582
      %s585 = sshll.u32 [#allocation7], 4
      %s586 = int_to_ptr.vmem [resolvable:$true] %s585
      %588 = dma.vmem_to_hbm [thread:$0]  %s586, 64, %s3, [#allocation4]
    $region25: #{tpu_custom_call.1} parent=1 // pred_fallthru
      _
    // Predicated region
    $region26: #{tpu_custom_call.1} parent=1 // pred_check
      _
    $region27: #{tpu_custom_call.1} parent=1 // pred_check_branch
      %590 = sbr.rel (0) target = $region29
    $region28: #{tpu_custom_call.1} parent=1 // pred_region
      %591 = dma.done [#allocation4], 64
    $region29: #{tpu_custom_call.1} parent=1 // pred_fallthru
      _
    %592 = vsyncpa [#allocation3], 1
    %593 = vsyncpa [#allocation6], 1
    %594 = vsyncpa [#allocation4], 1

</llo_original>
